<compile_context>
chip_gen: v7x
topology: tpu7x:2x2x1
jax: 0.10.0
libtpu: 0.0.40
codegen_flags: <defaults>
</compile_context>

<pallas_src>
import functools

import numpy as np
import jax
import jax.numpy as jnp
from jax.experimental import pallas as pl
from jax.experimental.pallas import tpu as pltpu


def _cdiv(a, b):
    return -(-a // b)


def _round_up(x, m):
    return ((x + m - 1) // m) * m


def _choose_feature_tiling(dim, cap):
    """Pick the feature tile (shared by N and K) and the padded feature dim.

    Returns (tile, padded_dim). padded_dim == dim when no padding is needed.
    """
    cap = max(128, (cap // 128) * 128)
    if dim <= cap:
        return dim, dim
    t = cap
    while t >= 256:
        if dim % t == 0:
            return t, dim
        t -= 128
    # No nice multiple-of-128 divisor: zero-pad K/N up to a multiple of a
    # moderate tile instead of collapsing to tiny tiles or a huge full block.
    t = min(512, cap)
    return t, _round_up(dim, t)


# ---------------------------------------------------------------------------
# Kernels
# ---------------------------------------------------------------------------

def _fusion_kernel_single(x1_ref, x2_ref, w1_ref, w2_ref, b_ref, o_ref, *, cdt):
    """K fits in one block: no accumulator scratch, straight store."""
    acc = jnp.dot(x1_ref[...].astype(cdt), w1_ref[...],
                  preferred_element_type=jnp.float32)
    acc = acc + jnp.dot(x2_ref[...].astype(cdt), w2_ref[...],
                        preferred_element_type=jnp.float32)
    o_ref[...] = (acc + b_ref[...]).astype(o_ref.dtype)


def _fusion_kernel_acc(x1_ref, x2_ref, w1_ref, w2_ref, b_ref, o_ref, acc_ref,
                       *, cdt):
    """K tiled across grid axis 2: f32 accumulator initialised with the bias."""
    k = pl.program_id(2)

    @pl.when(k == 0)
    def _():
        acc_ref[...] = jnp.broadcast_to(b_ref[...], acc_ref.shape)

    acc_ref[...] += jnp.dot(x1_ref[...].astype(cdt), w1_ref[...],
                            preferred_element_type=jnp.float32)
    acc_ref[...] += jnp.dot(x2_ref[...].astype(cdt), w2_ref[...],
                            preferred_element_type=jnp.float32)

    @pl.when(k == pl.num_programs(2) - 1)
    def _():
        o_ref[...] = acc_ref[...].astype(o_ref.dtype)


# ---------------------------------------------------------------------------
# Wrapper
# ---------------------------------------------------------------------------

def fusion(x1, x2, weight, bias, *, tm=512, compute_dtype=None,
           feature_cap=1024, min_pallas_dim=128):
    """Pallas implementation of Fusion.forward.

    weight: (dim_in, 2*dim_in)  -- torch.nn.Linear.weight layout
    bias:   (dim_in,)
    compute_dtype: optional narrow dtype (e.g. jnp.bfloat16) for the matmul
                   inputs (cast in-kernel); accumulation stays f32.
    """
    if x2 is None:
        return x1

    dim_in = x1.shape[-1]
    assert weight.shape == (dim_in, 2 * dim_in)
    assert x2.shape == x1.shape
    lead = x1.shape[:-1]
    out_dtype = x1.dtype

    # out = cat([x1,x2]) @ W.T + b  with  W = [W1 | W2]  (N, 2K)
    #     = x1 @ W1.T + x2 @ W2.T + b
    # Pre-transpose the halves ONCE so the kernel contracts a plain (K, N) RHS.
    w1t = weight[:, :dim_in].T          # (K, N)
    w2t = weight[:, dim_in:].T          # (K, N)

    # Tiny feature widths: a Pallas launch loses to XLA fusion outright.
    if dim_in < min_pallas_dim:
        out = (jnp.einsum('...k,kn->...n', x1, w1t)
               + jnp.einsum('...k,kn->...n', x2, w2t) + bias)
        return out.astype(out_dtype)

    x_dt = jnp.dtype(x1.dtype)
    cdt = jnp.dtype(compute_dtype) if compute_dtype is not None else x_dt

    M0 = int(np.prod(lead)) if lead else 1
    x1f = x1.reshape(M0, dim_in)
    x2f = x2.reshape(M0, dim_in)

    g = 8 if x_dt.itemsize >= 4 else 16   # sublane granule of stored dtype
    M = M0
    if M < g:
        # Only for tiny leading sizes: a few padded rows, negligible copy.
        x1f = jnp.pad(x1f, ((0, g - M), (0, 0)))
        x2f = jnp.pad(x2f, ((0, g - M), (0, 0)))
        M = g

    # Feature (N and K) tiling; zero-pad only when dim_in has no clean divisor.
    tfeat, dim_pad = _choose_feature_tiling(dim_in, feature_cap)
    tn = tk = tfeat
    if dim_pad != dim_in:
        pad = dim_pad - dim_in
        x1f = jnp.pad(x1f, ((0, 0), (0, pad)))
        x2f = jnp.pad(x2f, ((0, 0), (0, pad)))
        w1t = jnp.pad(w1t, ((0, pad), (0, pad)))
        w2t = jnp.pad(w2t, ((0, pad), (0, pad)))
        bias = jnp.pad(bias, ((0, pad),))

    # Weights: one-time cast in HBM (amortised over all of M).
    w1c = w1t.astype(cdt)
    w2c = w2t.astype(cdt)
    b2 = bias.reshape(1, dim_pad).astype(jnp.float32)

    # Row tile: spread M evenly over ceil(M/tm) tiles, round to the sublane
    # granule, never exceed M. Boundary blocks are handled by the cdiv grid
    # (masked output writes), so no full-tensor padding of the activations.
    n_m_tgt = max(1, _cdiv(M, max(tm, g)))
    tm_eff = min(_round_up(_cdiv(M, n_m_tgt), g), (M // g) * g)
    tm_eff = max(tm_eff, g)
    n_m = _cdiv(M, tm_eff)
    n_n = dim_pad // tn
    nk = dim_pad // tk

    # v7x megacore: make sure at least one 'parallel' axis has >= 2 blocks.
    if n_m == 1 and n_n == 1 and M >= 2 * g:
        tm_eff = _round_up(_cdiv(M, 2), g)
        n_m = _cdiv(M, tm_eff)

    use_acc = nk > 1

    if use_acc:
        kernel = functools.partial(_fusion_kernel_acc, cdt=cdt)
        grid = (n_m, n_n, nk)
        in_specs = [
            pl.BlockSpec((tm_eff, tk), lambda i, j, k: (i, k)),   # x1
            pl.BlockSpec((tm_eff, tk), lambda i, j, k: (i, k)),   # x2
            pl.BlockSpec((tk, tn), lambda i, j, k: (k, j)),       # W1^T
            pl.BlockSpec((tk, tn), lambda i, j, k: (k, j)),       # W2^T
            pl.BlockSpec((1, tn), lambda i, j, k: (0, j)),        # bias
        ]
        out_specs = pl.BlockSpec((tm_eff, tn), lambda i, j, k: (i, j))
        scratch_shapes = [pltpu.VMEM((tm_eff, tn), jnp.float32)]
        dim_sem = ("parallel", "parallel", "arbitrary")
    else:
        kernel = functools.partial(_fusion_kernel_single, cdt=cdt)
        grid = (n_m, n_n)
        in_specs = [
            pl.BlockSpec((tm_eff, tk), lambda i, j: (i, 0)),      # x1
            pl.BlockSpec((tm_eff, tk), lambda i, j: (i, 0)),      # x2
            pl.BlockSpec((tk, tn), lambda i, j: (0, j)),          # W1^T
            pl.BlockSpec((tk, tn), lambda i, j: (0, j)),          # W2^T
            pl.BlockSpec((1, tn), lambda i, j: (0, j)),           # bias
        ]
        out_specs = pl.BlockSpec((tm_eff, tn), lambda i, j: (i, j))
        scratch_shapes = []
        dim_sem = ("parallel", "parallel")

    # VMEM budget from the actual (double-buffered) block sizes + headroom.
    x_blk = tm_eff * tk * x_dt.itemsize
    w_blk = tk * tn * cdt.itemsize
    o_blk = tm_eff * tn * jnp.dtype(out_dtype).itemsize
    b_blk = 8 * tn * 4
    blk_bytes = 2 * (2 * x_blk + 2 * w_blk + b_blk + o_blk)
    if use_acc:
        blk_bytes += tm_eff * tn * 4
    vmem_limit = int(min(max(blk_bytes * 3 // 2 + (2 << 20), 16 << 20),
                         64 << 20))   # stay inside v7x's 64 MiB per TC

    flops = 4 * M * dim_pad * dim_pad
    bytes_accessed = int(
        2 * M * dim_pad * x_dt.itemsize            # x1, x2
        + 2 * dim_pad * dim_pad * cdt.itemsize     # W1, W2
        + dim_pad * 4                              # bias
        + M * dim_pad * jnp.dtype(out_dtype).itemsize)  # out

    out = pl.pallas_call(
        kernel,
        out_shape=jax.ShapeDtypeStruct((M, dim_pad), out_dtype),
        grid_spec=pltpu.PrefetchScalarGridSpec(
            num_scalar_prefetch=0,
            grid=grid,
            in_specs=in_specs,
            out_specs=out_specs,
            scratch_shapes=scratch_shapes,
        ),
        compiler_params=pltpu.CompilerParams(
            dimension_semantics=dim_sem,
            vmem_limit_bytes=vmem_limit,
        ),
        cost_estimate=pl.CostEstimate(
            flops=flops, transcendentals=0, bytes_accessed=bytes_accessed),
    )(x1f, x2f, w1c, w2c, b2)

    if M != M0 or dim_pad != dim_in:
        out = out[:M0, :dim_in]
    return out.reshape(*lead, dim_in)


def fusion_ref(x1, x2, weight, bias):
    if x2 is None:
        return x1
    cat = jnp.concatenate([x1, x2], axis=-1)
    return cat @ weight.T + bias


if __name__ == "__main__":
    key = jax.random.PRNGKey(0)
    k1, k2, kw, kb = jax.random.split(key, 4)

    # Lane-dense feature width so the Pallas path is exercised.
    batch, seq, dim_in = 2, 8, 128
    x1 = jax.random.normal(k1, (batch, seq, dim_in), dtype=jnp.float32)
    x2 = jax.random.normal(k2, (batch, seq, dim_in), dtype=jnp.float32)

    bound = 1.0 / np.sqrt(2 * dim_in)
    weight = jax.random.uniform(kw, (dim_in, 2 * dim_in),
                                minval=-bound, maxval=bound,
                                dtype=jnp.float32)
    bias = jax.random.uniform(kb, (dim_in,), minval=-bound, maxval=bound,
                              dtype=jnp.float32)

    ref = fusion_ref(x1, x2, weight, bias)

    # 1) f32 Pallas path (nk == 1, no scratch; M split for megacore).
    out = jax.block_until_ready(fusion(x1, x2, weight, bias))
    np.testing.assert_allclose(np.asarray(out), np.asarray(ref),
                               rtol=1e-5, atol=1e-4)

    # 2) Non-divisible leading size (cdiv grid, partial boundary blocks,
    #    no full-tensor padding).
    x1b = jax.random.normal(k1, (3, 5, 7, dim_in), dtype=jnp.float32)
    x2b = jax.random.normal(k2, (3, 5, 7, dim_in), dtype=jnp.float32)
    outb = jax.block_until_ready(fusion(x1b, x2b, weight, bias))
    refb = fusion_ref(x1b, x2b, weight, bias)
    np.testing.assert_allclose(np.asarray(outb), np.asarray(refb),
                               rtol=1e-5, atol=1e-4)

    # 3) bf16 compute (in-kernel cast) with f32 accumulation.
    outh = jax.block_until_ready(
        fusion(x1, x2, weight, bias, compute_dtype=jnp.bfloat16))
    np.testing.assert_allclose(np.asarray(outh), np.asarray(ref),
                               rtol=3e-2, atol=3e-2)

    # 4) K-tiled accumulator path (small feature_cap forces nk > 1).
    d4 = 256
    x14 = jax.random.normal(k1, (batch, seq, d4), dtype=jnp.float32)
    x24 = jax.random.normal(k2, (batch, seq, d4), dtype=jnp.float32)
    b4 = 1.0 / np.sqrt(2 * d4)
    w4 = jax.random.uniform(kw, (d4, 2 * d4), minval=-b4, maxval=b4,
                            dtype=jnp.float32)
    bias4 = jax.random.uniform(kb, (d4,), minval=-b4, maxval=b4,
                               dtype=jnp.float32)
    out4 = jax.block_until_ready(fusion(x14, x24, w4, bias4, feature_cap=128))
    np.testing.assert_allclose(np.asarray(out4),
                               np.asarray(fusion_ref(x14, x24, w4, bias4)),
                               rtol=1e-5, atol=1e-4)

    # 5) Non-divisible feature width -> zero-padded K/N tiling.
    d5 = 192
    x15 = jax.random.normal(k1, (batch, seq, d5), dtype=jnp.float32)
    x25 = jax.random.normal(k2, (batch, seq, d5), dtype=jnp.float32)
    b5 = 1.0 / np.sqrt(2 * d5)
    w5 = jax.random.uniform(kw, (d5, 2 * d5), minval=-b5, maxval=b5,
                            dtype=jnp.float32)
    bias5 = jax.random.uniform(kb, (d5,), minval=-b5, maxval=b5,
                               dtype=jnp.float32)
    out5 = jax.block_until_ready(fusion(x15, x25, w5, bias5, feature_cap=128))
    np.testing.assert_allclose(np.asarray(out5),
                               np.asarray(fusion_ref(x15, x25, w5, bias5)),
                               rtol=1e-5, atol=1e-4)

    # 6) Tiny leading size (M < sublane granule): small row pad path.
    x16 = jax.random.normal(k1, (5, dim_in), dtype=jnp.float32)
    x26 = jax.random.normal(k2, (5, dim_in), dtype=jnp.float32)
    out6 = jax.block_until_ready(fusion(x16, x26, weight, bias))
    np.testing.assert_allclose(np.asarray(out6),
                               np.asarray(fusion_ref(x16, x26, weight, bias)),
                               rtol=1e-5, atol=1e-4)

    # 7) Tiny feature width (dim_in=32): dispatches to plain XLA, no kernel.
    dsmall = 32
    x1s = jax.random.normal(k1, (batch, seq, dsmall), dtype=jnp.float32)
    x2s = jax.random.normal(k2, (batch, seq, dsmall), dtype=jnp.float32)
    ws = jax.random.uniform(kw, (dsmall, 2 * dsmall), dtype=jnp.float32)
    bs = jax.random.uniform(kb, (dsmall,), dtype=jnp.float32)
    outs = jax.block_until_ready(fusion(x1s, x2s, ws, bs))
    np.testing.assert_allclose(np.asarray(outs),
                               np.asarray(fusion_ref(x1s, x2s, ws, bs)),
                               rtol=1e-5, atol=1e-5)

    # 8) x2 is None -> identity (matches the PyTorch module).
    out_none = fusion(x1, None, weight, bias)
    np.testing.assert_allclose(np.asarray(out_none), np.asarray(x1))

    print("KERNEL_OK")
</pallas_src>

<mosaic_0001>
module attributes {stable_mosaic.version = 11 : i64} {
  func.func @_fusion_kernel_single(%arg0: i32, %arg1: i32, %arg2: memref<8x128xf32, #tpu.memory_space<vmem>>, %arg3: memref<8x128xf32, #tpu.memory_space<vmem>>, %arg4: memref<128x128xf32, #tpu.memory_space<vmem>>, %arg5: memref<128x128xf32, #tpu.memory_space<vmem>>, %arg6: memref<1x128xf32, #tpu.memory_space<vmem>>, %arg7: memref<8x128xf32, #tpu.memory_space<vmem>>) attributes {dimension_semantics = [#tpu.dimension_semantics<parallel>, #tpu.dimension_semantics<parallel>], iteration_bounds = array<i64: 2, 1>, scalar_prefetch = 0 : i64, scratch_operands = 0 : i64, tpu.core_type = #tpu.core_type<tc>, window_params = [{transform_indices = @transform_0, window_bounds = array<i64: 8, 128>}, {transform_indices = @transform_1, window_bounds = array<i64: 8, 128>}, {transform_indices = @transform_2, window_bounds = array<i64: 128, 128>}, {transform_indices = @transform_3, window_bounds = array<i64: 128, 128>}, {transform_indices = @transform_4, window_bounds = array<i64: 1, 128>}, {transform_indices = @transform_5, window_bounds = array<i64: 8, 128>}]} {
    %c0 = arith.constant 0 : index
    %c0_0 = arith.constant 0 : index
    %0 = vector.load %arg2[%c0, %c0_0] : memref<8x128xf32, #tpu.memory_space<vmem>>, vector<8x128xf32>
    %c0_1 = arith.constant 0 : index
    %c0_2 = arith.constant 0 : index
    %1 = vector.load %arg4[%c0_1, %c0_2] : memref<128x128xf32, #tpu.memory_space<vmem>>, vector<128x128xf32>
    %cst = arith.constant dense<0.000000e+00> : vector<8x128xf32>
    %2 = tpu.matmul %0, %1, %cst {dimension_numbers = #tpu.dot_dimension_numbers<[1], [0], [0], [1], [0, 0, 1, 1], [], []>} : vector<8x128xf32>, vector<128x128xf32>, vector<8x128xf32> -> vector<8x128xf32>
    %c0_3 = arith.constant 0 : index
    %c0_4 = arith.constant 0 : index
    %3 = vector.load %arg3[%c0_3, %c0_4] : memref<8x128xf32, #tpu.memory_space<vmem>>, vector<8x128xf32>
    %c0_5 = arith.constant 0 : index
    %c0_6 = arith.constant 0 : index
    %4 = vector.load %arg5[%c0_5, %c0_6] : memref<128x128xf32, #tpu.memory_space<vmem>>, vector<128x128xf32>
    %cst_7 = arith.constant dense<0.000000e+00> : vector<8x128xf32>
    %5 = tpu.matmul %3, %4, %cst_7 {dimension_numbers = #tpu.dot_dimension_numbers<[1], [0], [0], [1], [0, 0, 1, 1], [], []>} : vector<8x128xf32>, vector<128x128xf32>, vector<8x128xf32> -> vector<8x128xf32>
    %6 = arith.addf %2, %5 : vector<8x128xf32>
    %c0_8 = arith.constant 0 : index
    %c0_9 = arith.constant 0 : index
    %7 = vector.load %arg6[%c0_8, %c0_9] : memref<1x128xf32, #tpu.memory_space<vmem>>, vector<1x128xf32>
    %8 = vector.broadcast %7 : vector<1x128xf32> to vector<8x128xf32>
    %9 = arith.addf %6, %8 : vector<8x128xf32>
    %c0_10 = arith.constant 0 : index
    %c0_11 = arith.constant 0 : index
    %10 = vector.load %arg7[%c0_10, %c0_11] : memref<8x128xf32, #tpu.memory_space<vmem>>, vector<8x128xf32>
    tpu.vector_store %arg7[%c0_10, %c0_11], %9 {strides = array<i32>} : memref<8x128xf32, #tpu.memory_space<vmem>>, vector<8x128xf32>,
    return
  }
  func.func @transform_0(%arg0: i32, %arg1: i32) -> (i32, i32) {
    %c0_i32 = arith.constant 0 : i32
    %c0_i32_0 = arith.constant 0 : i32
    return %arg0, %c0_i32 : i32, i32
  }
  func.func @transform_1(%arg0: i32, %arg1: i32) -> (i32, i32) {
    %c0_i32 = arith.constant 0 : i32
    %c0_i32_0 = arith.constant 0 : i32
    return %arg0, %c0_i32 : i32, i32
  }
  func.func @transform_2(%arg0: i32, %arg1: i32) -> (i32, i32) {
    %c0_i32 = arith.constant 0 : i32
    %c0_i32_0 = arith.constant 0 : i32
    return %c0_i32, %arg1 : i32, i32
  }
  func.func @transform_3(%arg0: i32, %arg1: i32) -> (i32, i32) {
    %c0_i32 = arith.constant 0 : i32
    %c0_i32_0 = arith.constant 0 : i32
    return %c0_i32, %arg1 : i32, i32
  }
  func.func @transform_4(%arg0: i32, %arg1: i32) -> (i32, i32) {
    %c0_i32 = arith.constant 0 : i32
    %c0_i32_0 = arith.constant 0 : i32
    return %c0_i32, %arg1 : i32, i32
  }
  func.func @transform_5(%arg0: i32, %arg1: i32) -> (i32, i32) {
    %c0_i32 = arith.constant 0 : i32
    return %arg0, %arg1 : i32, i32
  }
}

</mosaic_0001>

<llo_original>
// kernel: tpu_custom_call.1
$region0: #{tpu_custom_call.1}
  #allocation0 [shape = 'u32[]', space=smem, size = 0x4, offset = 0x4, fixed_abs, tag = 'smem constant byte address 0x4 - core index']
  #allocation1 [shape = 'u32[144,128]{1,0:T(1,128)}', space=vmem, size = 0x12000, scoped, tag = 'internal scratch']
  %s0 = inlined_call_operand.hbm [shape: f32[16,128], index: 0, kind: input, shape index: {}]
  %s1 = inlined_call_operand.hbm [shape: f32[16,128], index: 1, kind: input, shape index: {}]
  %s2 = inlined_call_operand.hbm [shape: f32[128,128], index: 2, kind: input, shape index: {}]
  %s3 = inlined_call_operand.hbm [shape: f32[128,128], index: 3, kind: input, shape index: {}]
  %s4 = inlined_call_operand.vmem [shape: f32[1,128], index: 4, kind: input, shape index: {}]
  %s5 = inlined_call_operand.hbm [shape: f32[16,128], index: 5, kind: output, shape index: {}]
  %s6 = sld [smem:[#allocation0]]
  $region69: #{tpu_custom_call.1} parent=0
    _
  %s8 = ssub.s32 1, %s6
  %s9 = scalar_select 0, %s8, %s6
  $region1: #{tpu_custom_call.1} parent=0
    #allocation2 [shape = 'u8[8192]{0}', space=vmem, size = 0x2000, scoped, tag = 'input window, operand 0']
    #allocation3 [shape = 's32[2]{0}', space=sflag, size = 0x8, scoped, tag = 'scoped memory for tpu_custom_call.1']
    #allocation4 [shape = 's32[2]{0}', space=sflag, size = 0x8, scoped, tag = 'scoped memory for tpu_custom_call.1']
    #allocation5 [shape = 'u8[8192]{0}', space=vmem, size = 0x2000, scoped, tag = 'input window, operand 1']
    #allocation6 [shape = 's32[2]{0}', space=sflag, size = 0x8, scoped, tag = 'scoped memory for tpu_custom_call.1']
    #allocation7 [shape = 'u8[65536]{0}', space=vmem, size = 0x10000, scoped, tag = 'input window, operand 2, single buffered']
    #allocation8 [shape = 'u8[65536]{0}', space=vmem, size = 0x10000, scoped, tag = 'input window, operand 3, single buffered']
    #allocation9 [shape = 's32[1]{0}', space=sflag, size = 0x4, scoped, tag = 'scoped memory for tpu_custom_call.1']
    #allocation10 [shape = 'u8[8192]{0}', space=vmem, size = 0x2000, scoped, tag = 'output window, operand 0']
    %10 = vsyncpa [#allocation3], 0
    %s11 = scalar_lea.sflag [#allocation3], 1
    %12 = vsyncpa %s11, 0
    %13 = vsyncpa [#allocation6], 0
    %s14 = scalar_lea.sflag [#allocation6], 1
    %15 = vsyncpa %s14, 0
    %16 = vsyncpa [#allocation9], 0
    %17 = vsyncpa [#allocation4], 0
    %s18 = scalar_lea.sflag [#allocation4], 1
    %19 = vsyncpa %s18, 0
    loop: start=0, step=1, limit=4
    $region2: #{tpu_custom_call.1} parent=1 // loop_pre_header
      _
    $region3: #{tpu_custom_call.1} parent=1 // loop_header
      %s21 = sphi 0, %s25
      %p22 = scmp.ge.s32.totalorder %s21, 4
      %s28 = sphi 0, %s40
      %s29 = sphi 0, %s36
      %s30 = sphi 0, %s28
      %s31 = sphi 0, %s29
      %s32 = sphi 0, %s30
      %s33 = sphi 0, %s31
      %s43 = sphi 0, %s45
      %s46 = sphi 0, %s43
      %s47 = sphi 0, %s46
      %s63 = sphi 0, %s47
      %s69 = sphi 0, %s71
      %s72 = sphi 0, %s69
      %s73 = sphi 0, %s72
      %s89 = sphi 0, %s73
      %s95 = sphi 0, %s97
      %s98 = sphi 0, %s95
      %s99 = sphi 0, %s98
      %s115 = sphi 0, %s99
      %s121 = sphi 0, %s123
      %s124 = sphi 0, %s121
      %s125 = sphi 0, %s124
      %s141 = sphi 0, %s125
      %s147 = sphi 0, %s149
      %s150 = sphi 0, %s147
      %s151 = sphi 0, %s150
      %s167 = sphi 0, %s151
      %s175 = sphi 0, %s177
      %s178 = sphi 0, %s175
      %s179 = sphi 0, %s178
      %s195 = sphi 0, %s179
    $region4: #{tpu_custom_call.1} parent=1 // loop_header_branch
      %24 = sbr.rel (%p22) target = $region8
    $region5: #{tpu_custom_call.1} parent=1 // loop_body
      %s26 = ssub.s32 %s21, 1
      %s27 = ssub.s32 %s21, 2
      %s34 = sadd.s32 1, %s29
      %p35 = scmp.ge.s32.totalorder %s34, 1
      %s36 = scalar_select %p35, 0, %s34
      %s37 = sadd.s32 1, %s28
      %s38 = scalar_select %p35, %s37, %s28
      %p39 = scmp.ge.s32.totalorder %s38, 2
      %s40 = scalar_select %p39, 0, %s38
      %s41 = ssub.s32 %s28, %s40
      %p42 = scmp.eq.s32.totalorder %s41, 0
      %s44 = sadd.s32 %s43, 1
      %s45 = scalar_select %p42, %s43, %s44
      %p48 = pneg %p42
      %p49 = scmp.eq.s32.totalorder %s21, 1
      %p50 = por %p48, %p49
      %p51 = scmp.ne.s32.totalorder %s43, %s46
      %p52 = scmp.eq.s32.totalorder %s21, 0
      %p53 = por %p51, %p52
      %p54 = scmp.ne.s32.totalorder %s43, %s46
      %p55 = scmp.eq.s32.totalorder %s26, 1
      %p56 = por %p54, %p55
      %p57 = scmp.ne.s32.totalorder %s46, %s47
      %p58 = scmp.eq.s32.totalorder %s26, 0
      %p59 = por %p57, %p58
      %p60 = scmp.ne.s32.totalorder %s46, %s47
      %p61 = scmp.eq.s32.totalorder %s27, 1
      %p62 = por %p60, %p61
      %p64 = scmp.ne.s32.totalorder %s47, %s63
      %p65 = scmp.eq.s32.totalorder %s27, 0
      %p66 = por %p64, %p65
      %s67 = ssub.s32 %s28, %s40
      %p68 = scmp.eq.s32.totalorder %s67, 0
      %s70 = sadd.s32 %s69, 1
      %s71 = scalar_select %p68, %s69, %s70
      %p74 = pneg %p68
      %p75 = scmp.eq.s32.totalorder %s21, 1
      %p76 = por %p74, %p75
      %p77 = scmp.ne.s32.totalorder %s69, %s72
      %p78 = scmp.eq.s32.totalorder %s21, 0
      %p79 = por %p77, %p78
      %p80 = scmp.ne.s32.totalorder %s69, %s72
      %p81 = scmp.eq.s32.totalorder %s26, 1
      %p82 = por %p80, %p81
      %p83 = scmp.ne.s32.totalorder %s72, %s73
      %p84 = scmp.eq.s32.totalorder %s26, 0
      %p85 = por %p83, %p84
      %p86 = scmp.ne.s32.totalorder %s72, %s73
      %p87 = scmp.eq.s32.totalorder %s27, 1
      %p88 = por %p86, %p87
      %p90 = scmp.ne.s32.totalorder %s73, %s89
      %p91 = scmp.eq.s32.totalorder %s27, 0
      %p92 = por %p90, %p91
      %s93 = ssub.s32 %s29, %s36
      %p94 = scmp.eq.s32.totalorder %s93, 0
      %s96 = sadd.s32 %s95, 1
      %s97 = scalar_select %p94, %s95, %s96
      %p100 = pneg %p94
      %p101 = scmp.eq.s32.totalorder %s21, 1
      %p102 = por %p100, %p101
      %p103 = scmp.ne.s32.totalorder %s95, %s98
      %p104 = scmp.eq.s32.totalorder %s21, 0
      %p105 = por %p103, %p104
      %p106 = scmp.ne.s32.totalorder %s95, %s98
      %p107 = scmp.eq.s32.totalorder %s26, 1
      %p108 = por %p106, %p107
      %p109 = scmp.ne.s32.totalorder %s98, %s99
      %p110 = scmp.eq.s32.totalorder %s26, 0
      %p111 = por %p109, %p110
      %p112 = scmp.ne.s32.totalorder %s98, %s99
      %p113 = scmp.eq.s32.totalorder %s27, 1
      %p114 = por %p112, %p113
      %p116 = scmp.ne.s32.totalorder %s99, %s115
      %p117 = scmp.eq.s32.totalorder %s27, 0
      %p118 = por %p116, %p117
      %s119 = ssub.s32 %s29, %s36
      %p120 = scmp.eq.s32.totalorder %s119, 0
      %s122 = sadd.s32 %s121, 1
      %s123 = scalar_select %p120, %s121, %s122
      %p126 = pneg %p120
      %p127 = scmp.eq.s32.totalorder %s21, 1
      %p128 = por %p126, %p127
      %p129 = scmp.ne.s32.totalorder %s121, %s124
      %p130 = scmp.eq.s32.totalorder %s21, 0
      %p131 = por %p129, %p130
      %p132 = scmp.ne.s32.totalorder %s121, %s124
      %p133 = scmp.eq.s32.totalorder %s26, 1
      %p134 = por %p132, %p133
      %p135 = scmp.ne.s32.totalorder %s124, %s125
      %p136 = scmp.eq.s32.totalorder %s26, 0
      %p137 = por %p135, %p136
      %p138 = scmp.ne.s32.totalorder %s124, %s125
      %p139 = scmp.eq.s32.totalorder %s27, 1
      %p140 = por %p138, %p139
      %p142 = scmp.ne.s32.totalorder %s125, %s141
      %p143 = scmp.eq.s32.totalorder %s27, 0
      %p144 = por %p142, %p143
      %s145 = ssub.s32 %s29, %s36
      %p146 = scmp.eq.s32.totalorder %s145, 0
      %s148 = sadd.s32 %s147, 1
      %s149 = scalar_select %p146, %s147, %s148
      %p152 = pneg %p146
      %p153 = scmp.eq.s32.totalorder %s21, 1
      %p154 = por %p152, %p153
      %p155 = scmp.ne.s32.totalorder %s147, %s150
      %p156 = scmp.eq.s32.totalorder %s21, 0
      %p157 = por %p155, %p156
      %p158 = scmp.ne.s32.totalorder %s147, %s150
      %p159 = scmp.eq.s32.totalorder %s26, 1
      %p160 = por %p158, %p159
      %p161 = scmp.ne.s32.totalorder %s150, %s151
      %p162 = scmp.eq.s32.totalorder %s26, 0
      %p163 = por %p161, %p162
      %p164 = scmp.ne.s32.totalorder %s150, %s151
      %p165 = scmp.eq.s32.totalorder %s27, 1
      %p166 = por %p164, %p165
      %p168 = scmp.ne.s32.totalorder %s151, %s167
      %p169 = scmp.eq.s32.totalorder %s27, 0
      %p170 = por %p168, %p169
      %s171 = ssub.s32 %s28, %s40
      %s172 = ssub.s32 %s29, %s36
      %s173 = sor.u32 %s171, %s172
      %p174 = scmp.eq.s32.totalorder %s173, 0
      %s176 = sadd.s32 %s175, 1
      %s177 = scalar_select %p174, %s175, %s176
      %p180 = pneg %p174
      %p181 = scmp.eq.s32.totalorder %s21, 1
      %p182 = por %p180, %p181
      %p183 = scmp.ne.s32.totalorder %s175, %s178
      %p184 = scmp.eq.s32.totalorder %s21, 0
      %p185 = por %p183, %p184
      %p186 = scmp.ne.s32.totalorder %s175, %s178
      %p187 = scmp.eq.s32.totalorder %s26, 1
      %p188 = por %p186, %p187
      %p189 = scmp.ne.s32.totalorder %s178, %s179
      %p190 = scmp.eq.s32.totalorder %s26, 0
      %p191 = por %p189, %p190
      %p192 = scmp.ne.s32.totalorder %s178, %s179
      %p193 = scmp.eq.s32.totalorder %s27, 1
      %p194 = por %p192, %p193
      %p196 = scmp.ne.s32.totalorder %s179, %s195
      %p197 = scmp.eq.s32.totalorder %s27, 0
      %p198 = por %p196, %p197
      %p199 = scmp.le.s32.totalorder 1, %s21
      %p200 = scmp.lt.s32.totalorder %s21, 3
      %p201 = pnand %p199, %p200
      %p202 = pneg %p201
      // Predicated region
      $region9: #{tpu_custom_call.1} parent=5 // pred_check
        _
      $region10: #{tpu_custom_call.1} parent=5 // pred_check_branch
        %204 = sbr.rel (%p201) target = $region12
      $region11: #{tpu_custom_call.1} parent=5 // pred_region
        %s205 = ssub.s32 %s21, 1
        // Predicated region
        $region13: #{tpu_custom_call.1} parent=11 // pred_check
          %p206 = pneg %p111
        $region14: #{tpu_custom_call.1} parent=11 // pred_check_branch
          %208 = sbr.rel (%p206) target = $region16
        $region15: #{tpu_custom_call.1} parent=11 // pred_region
          %s210 = ssub.s32 2048, 2048
          %211 = vsyncadd [#allocation6], %s210
          %s212 = smul.addr %s31, 128
          %s213 = scalar_lea.hbm %s2, %s212
          %s214 = sshll.u32 [#allocation7], 4
          %s215 = int_to_ptr.vmem [resolvable:$true] %s214
          %220 = dma.hbm_to_vmem [thread:$0]  %s213, 2048, %s215, [#allocation6], 128, 128, 8
        $region16: #{tpu_custom_call.1} parent=11 // pred_fallthru
          _
        // Predicated region
        $region17: #{tpu_custom_call.1} parent=11 // pred_check
          %p221 = pneg %p137
        $region18: #{tpu_custom_call.1} parent=11 // pred_check_branch
          %223 = sbr.rel (%p221) target = $region20
        $region19: #{tpu_custom_call.1} parent=11 // pred_region
          %s225 = ssub.s32 2048, 2048
          %226 = vsyncadd [#allocation9], %s225
          %s227 = smul.addr %s31, 128
          %s228 = scalar_lea.hbm %s3, %s227
          %s229 = sshll.u32 [#allocation8], 4
          %s230 = int_to_ptr.vmem [resolvable:$true] %s229
          %235 = dma.hbm_to_vmem [thread:$0]  %s228, 2048, %s230, [#allocation9], 128, 128, 8
        $region20: #{tpu_custom_call.1} parent=11 // pred_fallthru
          _
        // Predicated region
        $region21: #{tpu_custom_call.1} parent=11 // pred_check
          %p236 = pneg %p163
        $region22: #{tpu_custom_call.1} parent=11 // pred_check_branch
          %238 = sbr.rel (%p236) target = $region24
        $region23: #{tpu_custom_call.1} parent=11 // pred_region
          %p239 = scmp.lt.s32.totalorder %s31, 0
          %s240 = scalar_select %p239, %s31, 0
          %s241 = scalar_lea.vmem %s4, %s240
        $region24: #{tpu_custom_call.1} parent=11 // pred_fallthru
          _
      $region12: #{tpu_custom_call.1} parent=5 // pred_fallthru
        _
      %p242 = scmp.lt.s32.totalorder %s21, 2
      // Predicated region
      $region25: #{tpu_custom_call.1} parent=5 // pred_check
        %p243 = pneg %p242
      $region26: #{tpu_custom_call.1} parent=5 // pred_check_branch
        %245 = sbr.rel (%p243) target = $region28
      $region27: #{tpu_custom_call.1} parent=5 // pred_region
        // Predicated region
        $region29: #{tpu_custom_call.1} parent=27 // pred_check
          %p246 = pneg %p53
        $region30: #{tpu_custom_call.1} parent=27 // pred_check_branch
          %248 = sbr.rel (%p246) target = $region32
        $region31: #{tpu_custom_call.1} parent=27 // pred_region
          %s249 = sand.u32 %s43, 1
          %s250 = scalar_lea.sflag [#allocation3], %s249
          %s251 = sand.u32 %s43, 1
          %s252 = smul.addr %s251, 8
          %s253 = scalar_lea.vmem [#allocation2], %s252
          %s255 = ssub.s32 128, 128
          %256 = vsyncadd %s250, %s255
          %s257 = smul.addr %s28, 128
          %s258 = scalar_lea.hbm %s0, %s257
          %s260 = sshll.u32 %s253, 4
          %s261 = int_to_ptr.vmem [resolvable:$true] %s260
          %263 = dma.hbm_to_vmem [thread:$0]  %s258, 128, %s261, %s250
        $region32: #{tpu_custom_call.1} parent=27 // pred_fallthru
          _
        // Predicated region
        $region33: #{tpu_custom_call.1} parent=27 // pred_check
          %p264 = pneg %p79
        $region34: #{tpu_custom_call.1} parent=27 // pred_check_branch
          %266 = sbr.rel (%p264) target = $region36
        $region35: #{tpu_custom_call.1} parent=27 // pred_region
          %s267 = sand.u32 %s21, 1
          %s268 = scalar_lea.sflag [#allocation6], %s267
          %s269 = sand.u32 %s69, 1
          %s270 = smul.addr %s269, 8
          %s271 = scalar_lea.vmem [#allocation5], %s270
          %s273 = ssub.s32 128, 128
          %274 = vsyncadd %s268, %s273
          %s275 = smul.addr %s28, 128
          %s276 = scalar_lea.hbm %s1, %s275
          %s278 = sshll.u32 %s271, 4
          %s279 = int_to_ptr.vmem [resolvable:$true] %s278
          %281 = dma.hbm_to_vmem [thread:$0]  %s276, 128, %s279, %s268
        $region36: #{tpu_custom_call.1} parent=27 // pred_fallthru
          _
      $region28: #{tpu_custom_call.1} parent=5 // pred_fallthru
        _
      %p282 = scmp.le.s32.totalorder 1, %s21
      %p283 = scmp.lt.s32.totalorder %s21, 3
      %p284 = pnand %p282, %p283
      %p285 = pneg %p284
      // Predicated region
      $region37: #{tpu_custom_call.1} parent=5 // pred_check
        _
      $region38: #{tpu_custom_call.1} parent=5 // pred_check_branch
        %287 = sbr.rel (%p284) target = $region40
      $region39: #{tpu_custom_call.1} parent=5 // pred_region
        %s288 = ssub.s32 %s21, 1
        %s289 = sand.u32 %s46, 1
        %s290 = scalar_lea.sflag [#allocation3], %s289
        %s291 = sand.u32 %s46, 1
        %s292 = smul.addr %s291, 8
        %s293 = scalar_lea.vmem [#allocation2], %s292
        // Predicated region
        $region41: #{tpu_custom_call.1} parent=39 // pred_check
          %p294 = pneg %p59
        $region42: #{tpu_custom_call.1} parent=39 // pred_check_branch
          %296 = sbr.rel (%p294) target = $region44
        $region43: #{tpu_custom_call.1} parent=39 // pred_region
          %297 = dma.done %s290, 128
        $region44: #{tpu_custom_call.1} parent=39 // pred_fallthru
          _
        %s298 = sand.u32 %s26, 1
        %s299 = scalar_lea.sflag [#allocation6], %s298
        %s300 = sand.u32 %s72, 1
        %s301 = smul.addr %s300, 8
        %s302 = scalar_lea.vmem [#allocation5], %s301
        // Predicated region
        $region45: #{tpu_custom_call.1} parent=39 // pred_check
          %p303 = pneg %p85
        $region46: #{tpu_custom_call.1} parent=39 // pred_check_branch
          %305 = sbr.rel (%p303) target = $region48
        $region47: #{tpu_custom_call.1} parent=39 // pred_region
          %306 = dma.done %s299, 128
        $region48: #{tpu_custom_call.1} parent=39 // pred_fallthru
          _
        // Predicated region
        $region49: #{tpu_custom_call.1} parent=39 // pred_check
          %p307 = pneg %p111
        $region50: #{tpu_custom_call.1} parent=39 // pred_check_branch
          %309 = sbr.rel (%p307) target = $region52
        $region51: #{tpu_custom_call.1} parent=39 // pred_region
          %310 = dma.done [#allocation6], 2048
        $region52: #{tpu_custom_call.1} parent=39 // pred_fallthru
          _
        // Predicated region
        $region53: #{tpu_custom_call.1} parent=39 // pred_check
          %p311 = pneg %p137
        $region54: #{tpu_custom_call.1} parent=39 // pred_check_branch
          %313 = sbr.rel (%p311) target = $region56
        $region55: #{tpu_custom_call.1} parent=39 // pred_region
          %314 = dma.done [#allocation9], 2048
        $region56: #{tpu_custom_call.1} parent=39 // pred_fallthru
          _
        %s315 = sand.u32 %s46, 1
        %s316 = scalar_lea.sflag [#allocation3], %s315
        %s317 = sand.u32 %s46, 1
        %s318 = smul.addr %s317, 8
        %s319 = scalar_lea.vmem [#allocation2], %s318
        %p320 = pneg %p59
        %p321 = pneg %p56
        %s322 = sand.u32 %s26, 1
        %s323 = scalar_lea.sflag [#allocation6], %s322
        %s324 = sand.u32 %s72, 1
        %s325 = smul.addr %s324, 8
        %s326 = scalar_lea.vmem [#allocation5], %s325
        %p327 = pneg %p85
        %p328 = pneg %p82
        %p329 = pneg %p111
        %p330 = pneg %p108
        %p331 = pneg %p137
        %p332 = pneg %p134
        %p333 = scmp.lt.s32.totalorder %s31, 0
        %s334 = scalar_select %p333, %s31, 0
        %s335 = scalar_lea.vmem %s4, %s334
        %p336 = pneg %p163
        %p337 = pneg %p160
        %p338 = pneg %p191
        %p339 = pneg %p188
        %s340 = sand.u32 %s178, 1
        %s341 = scalar_lea.sflag [#allocation4], %s340
        %s342 = sand.u32 %s178, 1
        %s343 = smul.addr %s342, 8
        %s344 = scalar_lea.vmem [#allocation10], %s343
        %p345 = scmp.lt.s32.totalorder %s31, 0
        %s346 = scalar_select %p345, %s31, 0
        %s347 = scalar_lea.vmem %s4, %s346
        %v348 = vld [vmem:[%s293] sm:$0xff]
        %v349 = vld [vmem:[#allocation7] sm:$0xff]
        %v350 = vld [vmem:[#allocation7 + $0x8] sm:$0xff]
        %v351 = vld [vmem:[#allocation7 + $0x10] sm:$0xff]
        %v352 = vld [vmem:[#allocation7 + $0x18] sm:$0xff]
        %v353 = vld [vmem:[#allocation7 + $0x20] sm:$0xff]
        %v354 = vld [vmem:[#allocation7 + $0x28] sm:$0xff]
        %v355 = vld [vmem:[#allocation7 + $0x30] sm:$0xff]
        %v356 = vld [vmem:[#allocation7 + $0x38] sm:$0xff]
        %v357 = vld [vmem:[#allocation7 + $0x40] sm:$0xff]
        %v358 = vld [vmem:[#allocation7 + $0x48] sm:$0xff]
        %v359 = vld [vmem:[#allocation7 + $0x50] sm:$0xff]
        %v360 = vld [vmem:[#allocation7 + $0x58] sm:$0xff]
        %v361 = vld [vmem:[#allocation7 + $0x60] sm:$0xff]
        %v362 = vld [vmem:[#allocation7 + $0x68] sm:$0xff]
        %v363 = vld [vmem:[#allocation7 + $0x70] sm:$0xff]
        %v364 = vld [vmem:[#allocation7 + $0x78] sm:$0xff]
        %v365 = vld [vmem:[%s302] sm:$0xff]
        %v366 = vld [vmem:[#allocation8] sm:$0xff]
        %v367 = vld [vmem:[#allocation8 + $0x8] sm:$0xff]
        %v368 = vld [vmem:[#allocation8 + $0x10] sm:$0xff]
        %v369 = vld [vmem:[#allocation8 + $0x18] sm:$0xff]
        %v370 = vld [vmem:[#allocation8 + $0x20] sm:$0xff]
        %v371 = vld [vmem:[#allocation8 + $0x28] sm:$0xff]
        %v372 = vld [vmem:[#allocation8 + $0x30] sm:$0xff]
        %v373 = vld [vmem:[#allocation8 + $0x38] sm:$0xff]
        %v374 = vld [vmem:[#allocation8 + $0x40] sm:$0xff]
        %v375 = vld [vmem:[#allocation8 + $0x48] sm:$0xff]
        %v376 = vld [vmem:[#allocation8 + $0x50] sm:$0xff]
        %v377 = vld [vmem:[#allocation8 + $0x58] sm:$0xff]
        %v378 = vld [vmem:[#allocation8 + $0x60] sm:$0xff]
        %v379 = vld [vmem:[#allocation8 + $0x68] sm:$0xff]
        %v380 = vld [vmem:[#allocation8 + $0x70] sm:$0xff]
        %v381 = vld [vmem:[#allocation8 + $0x78] sm:$0xff]
        %382 = vmatprep.subr.mxu0 0.0
        %383 = vmatpush1.msra.mxu0 %v366
        %384 = vmatprep.subr.mxu0 0.0
        %385 = vmatpush1.msra.mxu0 %v367
        %386 = vmatprep.subr.mxu0 0.0
        %387 = vmatpush1.msra.mxu0 %v368
        %388 = vmatprep.subr.mxu0 0.0
        %389 = vmatpush1.msra.mxu0 %v369
        %390 = vmatprep.subr.mxu0 0.0
        %391 = vmatpush1.msra.mxu0 %v370
        %392 = vmatprep.subr.mxu0 0.0
        %393 = vmatpush1.msra.mxu0 %v371
        %394 = vmatprep.subr.mxu0 0.0
        %395 = vmatpush1.msra.mxu0 %v372
        %396 = vmatprep.subr.mxu0 0.0
        %397 = vmatpush1.msra.mxu0 %v373
        %398 = vmatprep.subr.mxu0 0.0
        %399 = vmatpush1.msra.mxu0 %v374
        %400 = vmatprep.subr.mxu0 0.0
        %401 = vmatpush1.msra.mxu0 %v375
        %402 = vmatprep.subr.mxu0 0.0
        %403 = vmatpush1.msra.mxu0 %v376
        %404 = vmatprep.subr.mxu0 0.0
        %405 = vmatpush1.msra.mxu0 %v377
        %406 = vmatprep.subr.mxu0 0.0
        %407 = vmatpush1.msra.mxu0 %v378
        %408 = vmatprep.subr.mxu0 0.0
        %409 = vmatpush1.msra.mxu0 %v379
        %410 = vmatprep.subr.mxu0 0.0
        %411 = vmatpush1.msra.mxu0 %v380
        %412 = vmatprep.subr.mxu0 0.0
        %413 = vmatpush1.msra.mxu0 %v381
        %414 = vmatprep.subr.mxu0 0.0
        %415 = vmatpush1.msra.mxu0 0.0
        %416 = vmatprep.subr.mxu0 0.0
        %417 = vmatpush1.msra.mxu0 0.0
        %418 = vmatprep.subr.mxu0 0.0
        %419 = vmatpush1.msra.mxu0 0.0
        %420 = vmatprep.subr.mxu0 0.0
        %421 = vmatpush1.msra.mxu0 0.0
        %422 = vmatprep.subr.mxu0 0.0
        %423 = vmatpush1.msra.mxu0 0.0
        %424 = vmatprep.subr.mxu0 0.0
        %425 = vmatpush1.msra.mxu0 0.0
        %426 = vmatprep.subr.mxu0 0.0
        %427 = vmatpush1.msra.mxu0 0.0
        %428 = vmatprep.subr.mxu0 0.0
        %429 = vmatpush1.msra.mxu0 0.0
        %430 = vmatprep.subr.mxu0 0.0
        %431 = vmatpush1.msra.mxu0 0.0
        %432 = vmatprep.subr.mxu0 0.0
        %433 = vmatpush1.msra.mxu0 0.0
        %434 = vmatprep.subr.mxu0 0.0
        %435 = vmatpush1.msra.mxu0 0.0
        %436 = vmatprep.subr.mxu0 0.0
        %437 = vmatpush1.msra.mxu0 0.0
        %438 = vmatprep.subr.mxu0 0.0
        %439 = vmatpush1.msra.mxu0 0.0
        %440 = vmatprep.subr.mxu0 0.0
        %441 = vmatpush1.msra.mxu0 0.0
        %442 = vmatprep.subr.mxu0 0.0
        %443 = vmatpush1.msra.mxu0 0.0
        %444 = vmatprep.subr.mxu0 0.0
        %445 = vmatpush1.msra.mxu0 0.0
        %446 = vmatprep.mubr.f32.mxu0 0.0
        %447 = vmatmul.mubr.f32.gmra.mrb[0].mxu0 %v365
        %v448 = vpop.f32.mrb[0].mxu0
        %v449 = vadd.f32 0.0, %v448
        %v450 = vpop.f32.mrb[0].mxu0
        %451 = vdwg.mxu0
        %452 = vmatprep.subr.mxu0 0.0
        %453 = vmatpush1.msra.mxu0 %v349
        %454 = vmatprep.subr.mxu0 0.0
        %455 = vmatpush1.msra.mxu0 %v350
        %456 = vmatprep.subr.mxu0 0.0
        %457 = vmatpush1.msra.mxu0 %v351
        %458 = vmatprep.subr.mxu0 0.0
        %459 = vmatpush1.msra.mxu0 %v352
        %460 = vmatprep.subr.mxu0 0.0
        %461 = vmatpush1.msra.mxu0 %v353
        %462 = vmatprep.subr.mxu0 0.0
        %463 = vmatpush1.msra.mxu0 %v354
        %464 = vmatprep.subr.mxu0 0.0
        %465 = vmatpush1.msra.mxu0 %v355
        %466 = vmatprep.subr.mxu0 0.0
        %467 = vmatpush1.msra.mxu0 %v356
        %468 = vmatprep.subr.mxu0 0.0
        %469 = vmatpush1.msra.mxu0 %v357
        %470 = vmatprep.subr.mxu0 0.0
        %471 = vmatpush1.msra.mxu0 %v358
        %472 = vmatprep.subr.mxu0 0.0
        %473 = vmatpush1.msra.mxu0 %v359
        %474 = vmatprep.subr.mxu0 0.0
        %475 = vmatpush1.msra.mxu0 %v360
        %476 = vmatprep.subr.mxu0 0.0
        %477 = vmatpush1.msra.mxu0 %v361
        %478 = vmatprep.subr.mxu0 0.0
        %479 = vmatpush1.msra.mxu0 %v362
        %480 = vmatprep.subr.mxu0 0.0
        %481 = vmatpush1.msra.mxu0 %v363
        %482 = vmatprep.subr.mxu0 0.0
        %483 = vmatpush1.msra.mxu0 %v364
        %484 = vmatprep.subr.mxu0 0.0
        %485 = vmatpush1.msra.mxu0 0.0
        %486 = vmatprep.subr.mxu0 0.0
        %487 = vmatpush1.msra.mxu0 0.0
        %488 = vmatprep.subr.mxu0 0.0
        %489 = vmatpush1.msra.mxu0 0.0
        %490 = vmatprep.subr.mxu0 0.0
        %491 = vmatpush1.msra.mxu0 0.0
        %492 = vmatprep.subr.mxu0 0.0
        %493 = vmatpush1.msra.mxu0 0.0
        %494 = vmatprep.subr.mxu0 0.0
        %495 = vmatpush1.msra.mxu0 0.0
        %496 = vmatprep.subr.mxu0 0.0
        %497 = vmatpush1.msra.mxu0 0.0
        %498 = vmatprep.subr.mxu0 0.0
        %499 = vmatpush1.msra.mxu0 0.0
        %500 = vmatprep.subr.mxu0 0.0
        %501 = vmatpush1.msra.mxu0 0.0
        %502 = vmatprep.subr.mxu0 0.0
        %503 = vmatpush1.msra.mxu0 0.0
        %504 = vmatprep.subr.mxu0 0.0
        %505 = vmatpush1.msra.mxu0 0.0
        %506 = vmatprep.subr.mxu0 0.0
        %507 = vmatpush1.msra.mxu0 0.0
        %508 = vmatprep.subr.mxu0 0.0
        %509 = vmatpush1.msra.mxu0 0.0
        %510 = vmatprep.subr.mxu0 0.0
        %511 = vmatpush1.msra.mxu0 0.0
        %512 = vmatprep.subr.mxu0 0.0
        %513 = vmatpush1.msra.mxu0 0.0
        %514 = vmatprep.subr.mxu0 0.0
        %515 = vmatpush1.msra.mxu0 0.0
        %516 = vmatprep.mubr.f32.mxu0 0.0
        %517 = vmatmul.mubr.f32.gmra.mrb[0].mxu0 %v348
        %v518 = vpop.f32.mrb[0].mxu0
        %v519 = vadd.f32 %v449, %v518
        %v520 = vpop.f32.mrb[0].mxu0
        %521 = vdwg.mxu0
        %v522 = vld [vmem:[%s347] sm:$0x1]
        %v524 = vlaneseq
        %v525 = vshrl.u32 %v524, 7
        %v526 = vsub.s32 0, %v525
        %v527 = vrot.slane %v522, %v526
        %v529 = vadd.f32 %v519, %v527
        %530 = vst [vmem:[%s344] sm:$0xff] %v529
        %s531 = sand.u32 %s178, 1
        %s532 = scalar_lea.sflag [#allocation4], %s531
        %s533 = sand.u32 %s178, 1
        %s534 = smul.addr %s533, 8
        %s535 = scalar_lea.vmem [#allocation10], %s534
        // Predicated region
        $region57: #{tpu_custom_call.1} parent=39 // pred_check
          %p536 = pneg %p188
        $region58: #{tpu_custom_call.1} parent=39 // pred_check_branch
          %538 = sbr.rel (%p536) target = $region60
        $region59: #{tpu_custom_call.1} parent=39 // pred_region
          %s540 = ssub.s32 128, 128
          %541 = vsyncadd %s532, %s540
          %s542 = sadd.s32 %s31, %s30
          %s543 = smul.addr %s542, 128
          %s544 = scalar_lea.hbm %s5, %s543
          %s546 = sshll.u32 %s535, 4
          %s547 = int_to_ptr.vmem [resolvable:$true] %s546
          %549 = dma.vmem_to_hbm [thread:$0]  %s547, 128, %s544, %s532
        $region60: #{tpu_custom_call.1} parent=39 // pred_fallthru
          _
      $region40: #{tpu_custom_call.1} parent=5 // pred_fallthru
        _
      %p550 = scmp.le.s32.totalorder 2, %s21
      // Predicated region
      $region61: #{tpu_custom_call.1} parent=5 // pred_check
        %p551 = pneg %p550
      $region62: #{tpu_custom_call.1} parent=5 // pred_check_branch
        %553 = sbr.rel (%p551) target = $region64
      $region63: #{tpu_custom_call.1} parent=5 // pred_region
        %s554 = ssub.s32 %s21, 2
        // Predicated region
        $region65: #{tpu_custom_call.1} parent=63 // pred_check
          %p555 = pneg %p194
        $region66: #{tpu_custom_call.1} parent=63 // pred_check_branch
          %557 = sbr.rel (%p555) target = $region68
        $region67: #{tpu_custom_call.1} parent=63 // pred_region
          %s558 = sand.u32 %s179, 1
          %s559 = scalar_lea.sflag [#allocation4], %s558
          %s560 = sand.u32 %s179, 1
          %s561 = smul.addr %s560, 8
          %s562 = scalar_lea.vmem [#allocation10], %s561
          %563 = dma.done %s559, 128
        $region68: #{tpu_custom_call.1} parent=63 // pred_fallthru
          _
      $region64: #{tpu_custom_call.1} parent=5 // pred_fallthru
        _
    $region6: #{tpu_custom_call.1} parent=1 // loop_footer
      %s25 = sadd.s32 1, %s21
    $region7: #{tpu_custom_call.1} parent=1 // loop_footer_branch
      %20 = sbr.rel target = $region3
    $region8: #{tpu_custom_call.1} parent=1 // loop_exit
      _
    %564 = vsyncpa [#allocation3], 1
    %s565 = scalar_lea.sflag [#allocation3], 1
    %566 = vsyncpa %s565, 1
    %567 = vsyncpa [#allocation6], 1
    %s568 = scalar_lea.sflag [#allocation6], 1
    %569 = vsyncpa %s568, 1
    %570 = vsyncpa [#allocation9], 1
    %571 = vsyncpa [#allocation4], 1
    %s572 = scalar_lea.sflag [#allocation4], 1
    %573 = vsyncpa %s572, 1

</llo_original>
